<compile_context>
chip_gen: v7x
topology: tpu7x:2x2x1
jax: 0.10.0
libtpu: 0.0.40
codegen_flags: <defaults>
</compile_context>

<pallas_src>
import functools

import jax
import jax.numpy as jnp
from jax import lax
from jax.experimental import pallas as pl
from jax.experimental.pallas import tpu as pltpu


def _round_up(n, m=128):
    return ((n + m - 1) // m) * m


def _mlp_sim_bn_kernel(gamma_ref, x_ref, w1_ref, b1_ref, w2_ref, o_ref):
    gamma = gamma_ref[0]            # scalar, read from SMEM (scalar path)
    x = x_ref[...]                  # (B, P_pad)  f32
    w1 = w1_ref[...]                # (P_pad, W_pad)
    b1 = b1_ref[...]                # (1, W_pad)
    w2 = w2_ref[...]                # (W_pad, C_pad)

    # linear_1 + bias + ReLU   (MXU matmul, VPU elementwise)
    h = jnp.dot(x, w1, preferred_element_type=jnp.float32) + b1
    h = jnp.maximum(h, 0.0)         # (B, W_pad)

    # simplified batch norm, folded into one (1, W_pad) scale vector:
    #   gamma * h / sqrt(mean(h^2, axis=0) + eps)  ==  h * (gamma * rsqrt(...))
    # eps inside rsqrt keeps zero-padded feature columns exactly zero.
    scale = gamma * lax.rsqrt(jnp.mean(h * h, axis=0, keepdims=True) + 1e-6)
    h = h * scale                   # single broadcast multiply

    # linear_2 (no bias), lane-dense (C_pad = 128) output store.
    o_ref[...] = jnp.dot(h, w2, preferred_element_type=jnp.float32).astype(o_ref.dtype)


@functools.partial(jax.jit, static_argnames=())
def mlp_sim_bn_forward(x, w1, b1, w2, gamma):
    """x: (B, C, H, W) NCHW input. w1: (num_pixels, 50), b1: (50,),
    w2: (50, C), gamma: (1,). Returns squeezed logits like torch's .squeeze()."""
    B = x.shape[0]
    x_flat = x.reshape(B, -1)                     # nn.Flatten
    P = x_flat.shape[1]
    width = w1.shape[1]
    C_out = w2.shape[1]
    assert w1.shape == (P, width)
    assert w2.shape == (width, C_out)

    # Lane-align all last dims to 128 (zero padding; math unchanged).
    P_pad = _round_up(P)
    W_pad = _round_up(width)
    C_pad = _round_up(C_out)

    x_p = jnp.pad(x_flat.astype(jnp.float32), ((0, 0), (0, P_pad - P)))
    w1_p = jnp.pad(w1.astype(jnp.float32), ((0, P_pad - P), (0, W_pad - width)))
    b1_p = jnp.pad(b1.astype(jnp.float32).reshape(1, width),
                   ((0, 0), (0, W_pad - width)))
    w2_p = jnp.pad(w2.astype(jnp.float32),
                   ((0, W_pad - width), (0, C_pad - C_out)))
    gamma_s = gamma.reshape(1).astype(jnp.float32)

    out_p = pl.pallas_call(
        _mlp_sim_bn_kernel,
        out_shape=jax.ShapeDtypeStruct((B, C_pad), jnp.float32),
        in_specs=[
            pl.BlockSpec(memory_space=pltpu.MemorySpace.SMEM),   # gamma (scalar)
            pl.BlockSpec(memory_space=pltpu.MemorySpace.VMEM),   # x
            pl.BlockSpec(memory_space=pltpu.MemorySpace.VMEM),   # w1
            pl.BlockSpec(memory_space=pltpu.MemorySpace.VMEM),   # b1
            pl.BlockSpec(memory_space=pltpu.MemorySpace.VMEM),   # w2
        ],
        out_specs=pl.BlockSpec(memory_space=pltpu.MemorySpace.VMEM),
    )(gamma_s, x_p, w1_p, b1_p, w2_p)

    out = out_p[:, :C_out]                        # drop lane padding
    # torch: batched_x.squeeze() — drops all size-1 dims (latent pitfall at B=1)
    return jnp.squeeze(out)


if __name__ == "__main__":
    # Shapes implied by the module: B=8, input (8, 1, 8, 8) -> num_pixels=64,
    # width=50, C (classes) = 10.
    B, Cin, H, W = 8, 1, 8, 8
    num_pixels = Cin * H * W
    width = 50
    C = 10

    key = jax.random.PRNGKey(0)
    kx, kw1, kb1, kw2, kg = jax.random.split(key, 5)

    x = jax.random.normal(kx, (B, Cin, H, W), dtype=jnp.float32)
    # Deterministic parameter init (uniform fan-in scaling like nn.Linear).
    bound1 = 1.0 / (num_pixels ** 0.5)
    w1 = jax.random.uniform(kw1, (num_pixels, width), jnp.float32, -bound1, bound1)
    b1 = jax.random.uniform(kb1, (width,), jnp.float32, -bound1, bound1)
    bound2 = 1.0 / (width ** 0.5)
    w2 = jax.random.uniform(kw2, (width, C), jnp.float32, -bound2, bound2)
    gamma = jax.random.normal(kg, (1,), dtype=jnp.float32)

    out = mlp_sim_bn_forward(x, w1, b1, w2, gamma)
    jax.block_until_ready(out)

    # Pure-JAX reference (same math as the PyTorch module).
    xf = x.reshape(B, -1)
    h = jnp.maximum(xf @ w1 + b1, 0.0)
    sv = jnp.sqrt(jnp.mean(h * h, axis=0) + 1e-6)
    ref = jnp.squeeze((gamma[0] * h / sv) @ w2)

    assert out.shape == ref.shape, (out.shape, ref.shape)
    assert jnp.allclose(out, ref, atol=1e-4, rtol=1e-4)

    print("KERNEL_OK")
</pallas_src>

<mosaic_0001>
module attributes {stable_mosaic.version = 11 : i64} {
  func.func @_mlp_sim_bn_kernel(%arg0: memref<1xf32, #tpu.memory_space<smem>>, %arg1: memref<8x128xf32, #tpu.memory_space<vmem>>, %arg2: memref<128x128xf32, #tpu.memory_space<vmem>>, %arg3: memref<1x128xf32, #tpu.memory_space<vmem>>, %arg4: memref<128x128xf32, #tpu.memory_space<vmem>>, %arg5: memref<8x128xf32, #tpu.memory_space<vmem>>) attributes {dimension_semantics = [], scalar_prefetch = 0 : i64, scratch_operands = 0 : i64, tpu.core_type = #tpu.core_type<tc>} {
    %c0 = arith.constant 0 : index
    %0 = memref.load %arg0[%c0] : memref<1xf32, #tpu.memory_space<smem>>
    %c0_0 = arith.constant 0 : index
    %c0_1 = arith.constant 0 : index
    %1 = vector.load %arg1[%c0_0, %c0_1] : memref<8x128xf32, #tpu.memory_space<vmem>>, vector<8x128xf32>
    %c0_2 = arith.constant 0 : index
    %c0_3 = arith.constant 0 : index
    %2 = vector.load %arg2[%c0_2, %c0_3] : memref<128x128xf32, #tpu.memory_space<vmem>>, vector<128x128xf32>
    %c0_4 = arith.constant 0 : index
    %c0_5 = arith.constant 0 : index
    %3 = vector.load %arg3[%c0_4, %c0_5] : memref<1x128xf32, #tpu.memory_space<vmem>>, vector<1x128xf32>
    %c0_6 = arith.constant 0 : index
    %c0_7 = arith.constant 0 : index
    %4 = vector.load %arg4[%c0_6, %c0_7] : memref<128x128xf32, #tpu.memory_space<vmem>>, vector<128x128xf32>
    %cst = arith.constant dense<0.000000e+00> : vector<8x128xf32>
    %5 = tpu.matmul %1, %2, %cst {dimension_numbers = #tpu.dot_dimension_numbers<[1], [0], [0], [1], [0, 0, 1, 1], [], []>} : vector<8x128xf32>, vector<128x128xf32>, vector<8x128xf32> -> vector<8x128xf32>
    %6 = vector.broadcast %3 : vector<1x128xf32> to vector<8x128xf32>
    %7 = arith.addf %5, %6 : vector<8x128xf32>
    %cst_8 = arith.constant 0.000000e+00 : f32
    %8 = vector.broadcast %cst_8 : f32 to vector<8x128xf32>
    %9 = arith.maximumf %7, %8 : vector<8x128xf32>
    %10 = arith.mulf %9, %9 : vector<8x128xf32>
    %cst_9 = arith.constant dense<0.000000e+00> : vector<128xf32>
    %11 = vector.multi_reduction <add>, %10, %cst_9 [0] : vector<8x128xf32> to vector<128xf32>
    %12 = vector.shape_cast %11 : vector<128xf32> to vector<1x128xf32>
    %cst_10 = arith.constant 8.000000e+00 : f32
    %13 = vector.broadcast %cst_10 : f32 to vector<1x128xf32>
    %14 = arith.divf %12, %13 : vector<1x128xf32>
    %cst_11 = arith.constant 9.99999997E-7 : f32
    %15 = vector.broadcast %cst_11 : f32 to vector<1x128xf32>
    %16 = arith.addf %14, %15 : vector<1x128xf32>
    %17 = math.rsqrt %16 : vector<1x128xf32>
    %18 = vector.broadcast %0 : f32 to vector<1x128xf32>
    %19 = arith.mulf %18, %17 : vector<1x128xf32>
    %20 = vector.broadcast %19 : vector<1x128xf32> to vector<8x128xf32>
    %21 = arith.mulf %9, %20 : vector<8x128xf32>
    %cst_12 = arith.constant dense<0.000000e+00> : vector<8x128xf32>
    %22 = tpu.matmul %21, %4, %cst_12 {dimension_numbers = #tpu.dot_dimension_numbers<[1], [0], [0], [1], [0, 0, 1, 1], [], []>} : vector<8x128xf32>, vector<128x128xf32>, vector<8x128xf32> -> vector<8x128xf32>
    %c0_13 = arith.constant 0 : index
    %c0_14 = arith.constant 0 : index
    %23 = vector.load %arg5[%c0_13, %c0_14] : memref<8x128xf32, #tpu.memory_space<vmem>>, vector<8x128xf32>
    tpu.vector_store %arg5[%c0_13, %c0_14], %22 {strides = array<i32>} : memref<8x128xf32, #tpu.memory_space<vmem>>, vector<8x128xf32>,
    return
  }
}

</mosaic_0001>

<llo_original>
// kernel: mlp_sim_bn_forward.1
$region0: #{mlp_sim_bn_forward.1}
  #allocation0 [shape = 'u32[]', space=smem, size = 0x4, offset = 0x4, fixed_abs, tag = 'smem constant byte address 0x4 - core index']
  #allocation1 [shape = 'u32[144,128]{1,0:T(1,128)}', space=vmem, size = 0x12000, scoped, tag = 'internal scratch']
  #allocation2 [shape = 'f32[1]{0:T(128)S(6)}', space=smem, size = 0x200, scoped, tag = 'scoped memory for mlp_sim_bn_forward.1']
  %s0 = inlined_call_operand.<no memory space> [shape: f32[1], index: 0, kind: input, shape index: {}]
  %s1 = inlined_call_operand.vmem [shape: f32[8,128], index: 1, kind: input, shape index: {}]
  %s2 = inlined_call_operand.vmem [shape: f32[128,128], index: 2, kind: input, shape index: {}]
  %s3 = inlined_call_operand.vmem [shape: f32[1,128], index: 3, kind: input, shape index: {}]
  %s4 = inlined_call_operand.vmem [shape: f32[128,128], index: 4, kind: input, shape index: {}]
  %s5 = inlined_call_operand.hbm [shape: f32[8,128], index: 5, kind: output, shape index: {}]
  %s6 = sld [smem:[#allocation0]]
  $region30: #{mlp_sim_bn_forward.1} parent=0
    _
  %s8 = ssub.s32 1, %s6
  %s9 = scalar_select 0, %s8, %s6
  %10 = sst [smem:[#allocation2]] %s0
  $region1: #{mlp_sim_bn_forward.1} parent=0
    #allocation3 [shape = 'u8[4096]{0}', space=vmem, size = 0x1000, scoped, tag = 'output window, operand 0, single buffered']
    #allocation4 [shape = 's32[1]{0}', space=sflag, size = 0x4, scoped, tag = 'scoped memory for mlp_sim_bn_forward.1']
    %11 = vsyncpa [#allocation4], 0
    // Predicated region
    $region2: #{mlp_sim_bn_forward.1} parent=1 // pred_check
      _
    $region3: #{mlp_sim_bn_forward.1} parent=1 // pred_check_branch
      %13 = sbr.rel (0) target = $region5
    $region4: #{mlp_sim_bn_forward.1} parent=1 // pred_region
      _
    $region5: #{mlp_sim_bn_forward.1} parent=1 // pred_fallthru
      _
    // Predicated region
    $region6: #{mlp_sim_bn_forward.1} parent=1 // pred_check
      _
    $region7: #{mlp_sim_bn_forward.1} parent=1 // pred_check_branch
      %15 = sbr.rel (0) target = $region9
    $region8: #{mlp_sim_bn_forward.1} parent=1 // pred_region
      _
    $region9: #{mlp_sim_bn_forward.1} parent=1 // pred_fallthru
      _
    // Predicated region
    $region10: #{mlp_sim_bn_forward.1} parent=1 // pred_check
      _
    $region11: #{mlp_sim_bn_forward.1} parent=1 // pred_check_branch
      %17 = sbr.rel (0) target = $region13
    $region12: #{mlp_sim_bn_forward.1} parent=1 // pred_region
      _
    $region13: #{mlp_sim_bn_forward.1} parent=1 // pred_fallthru
      _
    // Predicated region
    $region14: #{mlp_sim_bn_forward.1} parent=1 // pred_check
      _
    $region15: #{mlp_sim_bn_forward.1} parent=1 // pred_check_branch
      %19 = sbr.rel (0) target = $region17
    $region16: #{mlp_sim_bn_forward.1} parent=1 // pred_region
      _
    $region17: #{mlp_sim_bn_forward.1} parent=1 // pred_fallthru
      _
    // Predicated region
    $region18: #{mlp_sim_bn_forward.1} parent=1 // pred_check
      _
    $region19: #{mlp_sim_bn_forward.1} parent=1 // pred_check_branch
      %21 = sbr.rel (0) target = $region21
    $region20: #{mlp_sim_bn_forward.1} parent=1 // pred_region
      _
    $region21: #{mlp_sim_bn_forward.1} parent=1 // pred_fallthru
      _
    %s22 = sld [smem:[#allocation2]]
    %v23 = vld [vmem:[%s1] sm:$0xff]
    %v24 = vld [vmem:[%s2] sm:$0xff]
    %v25 = vld [vmem:[%s2 + $0x8] sm:$0xff]
    %v26 = vld [vmem:[%s2 + $0x10] sm:$0xff]
    %v27 = vld [vmem:[%s2 + $0x18] sm:$0xff]
    %v28 = vld [vmem:[%s2 + $0x20] sm:$0xff]
    %v29 = vld [vmem:[%s2 + $0x28] sm:$0xff]
    %v30 = vld [vmem:[%s2 + $0x30] sm:$0xff]
    %v31 = vld [vmem:[%s2 + $0x38] sm:$0xff]
    %v32 = vld [vmem:[%s2 + $0x40] sm:$0xff]
    %v33 = vld [vmem:[%s2 + $0x48] sm:$0xff]
    %v34 = vld [vmem:[%s2 + $0x50] sm:$0xff]
    %v35 = vld [vmem:[%s2 + $0x58] sm:$0xff]
    %v36 = vld [vmem:[%s2 + $0x60] sm:$0xff]
    %v37 = vld [vmem:[%s2 + $0x68] sm:$0xff]
    %v38 = vld [vmem:[%s2 + $0x70] sm:$0xff]
    %v39 = vld [vmem:[%s2 + $0x78] sm:$0xff]
    %v40 = vld [vmem:[%s3] sm:$0x1]
    %v41 = vld [vmem:[%s4] sm:$0xff]
    %v42 = vld [vmem:[%s4 + $0x8] sm:$0xff]
    %v43 = vld [vmem:[%s4 + $0x10] sm:$0xff]
    %v44 = vld [vmem:[%s4 + $0x18] sm:$0xff]
    %v45 = vld [vmem:[%s4 + $0x20] sm:$0xff]
    %v46 = vld [vmem:[%s4 + $0x28] sm:$0xff]
    %v47 = vld [vmem:[%s4 + $0x30] sm:$0xff]
    %v48 = vld [vmem:[%s4 + $0x38] sm:$0xff]
    %v49 = vld [vmem:[%s4 + $0x40] sm:$0xff]
    %v50 = vld [vmem:[%s4 + $0x48] sm:$0xff]
    %v51 = vld [vmem:[%s4 + $0x50] sm:$0xff]
    %v52 = vld [vmem:[%s4 + $0x58] sm:$0xff]
    %v53 = vld [vmem:[%s4 + $0x60] sm:$0xff]
    %v54 = vld [vmem:[%s4 + $0x68] sm:$0xff]
    %v55 = vld [vmem:[%s4 + $0x70] sm:$0xff]
    %v56 = vld [vmem:[%s4 + $0x78] sm:$0xff]
    %v58 = vlaneseq
    %v59 = vshrl.u32 %v58, 7
    %v60 = vsub.s32 0, %v59
    %v61 = vrot.slane %v40, %v60
    %63 = vmatprep.subr.mxu0 0.0
    %64 = vmatpush1.msra.mxu0 %v24
    %65 = vmatprep.subr.mxu0 0.0
    %66 = vmatpush1.msra.mxu0 %v25
    %67 = vmatprep.subr.mxu0 0.0
    %68 = vmatpush1.msra.mxu0 %v26
    %69 = vmatprep.subr.mxu0 0.0
    %70 = vmatpush1.msra.mxu0 %v27
    %71 = vmatprep.subr.mxu0 0.0
    %72 = vmatpush1.msra.mxu0 %v28
    %73 = vmatprep.subr.mxu0 0.0
    %74 = vmatpush1.msra.mxu0 %v29
    %75 = vmatprep.subr.mxu0 0.0
    %76 = vmatpush1.msra.mxu0 %v30
    %77 = vmatprep.subr.mxu0 0.0
    %78 = vmatpush1.msra.mxu0 %v31
    %79 = vmatprep.subr.mxu0 0.0
    %80 = vmatpush1.msra.mxu0 %v32
    %81 = vmatprep.subr.mxu0 0.0
    %82 = vmatpush1.msra.mxu0 %v33
    %83 = vmatprep.subr.mxu0 0.0
    %84 = vmatpush1.msra.mxu0 %v34
    %85 = vmatprep.subr.mxu0 0.0
    %86 = vmatpush1.msra.mxu0 %v35
    %87 = vmatprep.subr.mxu0 0.0
    %88 = vmatpush1.msra.mxu0 %v36
    %89 = vmatprep.subr.mxu0 0.0
    %90 = vmatpush1.msra.mxu0 %v37
    %91 = vmatprep.subr.mxu0 0.0
    %92 = vmatpush1.msra.mxu0 %v38
    %93 = vmatprep.subr.mxu0 0.0
    %94 = vmatpush1.msra.mxu0 %v39
    %95 = vmatprep.subr.mxu0 0.0
    %96 = vmatpush1.msra.mxu0 0.0
    %97 = vmatprep.subr.mxu0 0.0
    %98 = vmatpush1.msra.mxu0 0.0
    %99 = vmatprep.subr.mxu0 0.0
    %100 = vmatpush1.msra.mxu0 0.0
    %101 = vmatprep.subr.mxu0 0.0
    %102 = vmatpush1.msra.mxu0 0.0
    %103 = vmatprep.subr.mxu0 0.0
    %104 = vmatpush1.msra.mxu0 0.0
    %105 = vmatprep.subr.mxu0 0.0
    %106 = vmatpush1.msra.mxu0 0.0
    %107 = vmatprep.subr.mxu0 0.0
    %108 = vmatpush1.msra.mxu0 0.0
    %109 = vmatprep.subr.mxu0 0.0
    %110 = vmatpush1.msra.mxu0 0.0
    %111 = vmatprep.subr.mxu0 0.0
    %112 = vmatpush1.msra.mxu0 0.0
    %113 = vmatprep.subr.mxu0 0.0
    %114 = vmatpush1.msra.mxu0 0.0
    %115 = vmatprep.subr.mxu0 0.0
    %116 = vmatpush1.msra.mxu0 0.0
    %117 = vmatprep.subr.mxu0 0.0
    %118 = vmatpush1.msra.mxu0 0.0
    %119 = vmatprep.subr.mxu0 0.0
    %120 = vmatpush1.msra.mxu0 0.0
    %121 = vmatprep.subr.mxu0 0.0
    %122 = vmatpush1.msra.mxu0 0.0
    %123 = vmatprep.subr.mxu0 0.0
    %124 = vmatpush1.msra.mxu0 0.0
    %125 = vmatprep.subr.mxu0 0.0
    %126 = vmatpush1.msra.mxu0 0.0
    %127 = vmatprep.mubr.f32.mxu0 0.0
    %128 = vmatmul.mubr.f32.gmra.mrb[0].mxu0 %v23
    %v129 = vpop.f32.mrb[0].mxu0
    %v130 = vadd.f32 %v61, %v129
    %v131 = vpop.f32.mrb[0].mxu0
    %132 = vdwg.mxu0
    %v133 = vmax.f32 %v130, 0.0
    %v134 = vmul.f32 %v133, %v133
    %v135 = vrot.slane %v134, 4
    %v136 = vadd.f32 %v134, %v135
    %v137 = vrot.slane %v136, 2
    %v138 = vadd.f32 %v136, %v137
    %v139 = vrot.slane %v138, 1
    %v140 = vadd.f32 %v138, %v139
    %v141 = vrcp.pop 8.0
    %v142 = vmul.f32 %v140, %v141
    %v143 = vadd.f32 %v142, 1e-06
    %v144 = vrsqrt.pop %v143
    %v145 = vstv %s22
    %v146 = vmul.f32 %v145, %v144
    %v147 = vmul.f32 %v133, %v146
    %148 = vmatprep.subr.mxu0 0.0
    %149 = vmatpush1.msra.mxu0 %v41
    %150 = vmatprep.subr.mxu0 0.0
    %151 = vmatpush1.msra.mxu0 %v42
    %152 = vmatprep.subr.mxu0 0.0
    %153 = vmatpush1.msra.mxu0 %v43
    %154 = vmatprep.subr.mxu0 0.0
    %155 = vmatpush1.msra.mxu0 %v44
    %156 = vmatprep.subr.mxu0 0.0
    %157 = vmatpush1.msra.mxu0 %v45
    %158 = vmatprep.subr.mxu0 0.0
    %159 = vmatpush1.msra.mxu0 %v46
    %160 = vmatprep.subr.mxu0 0.0
    %161 = vmatpush1.msra.mxu0 %v47
    %162 = vmatprep.subr.mxu0 0.0
    %163 = vmatpush1.msra.mxu0 %v48
    %164 = vmatprep.subr.mxu0 0.0
    %165 = vmatpush1.msra.mxu0 %v49
    %166 = vmatprep.subr.mxu0 0.0
    %167 = vmatpush1.msra.mxu0 %v50
    %168 = vmatprep.subr.mxu0 0.0
    %169 = vmatpush1.msra.mxu0 %v51
    %170 = vmatprep.subr.mxu0 0.0
    %171 = vmatpush1.msra.mxu0 %v52
    %172 = vmatprep.subr.mxu0 0.0
    %173 = vmatpush1.msra.mxu0 %v53
    %174 = vmatprep.subr.mxu0 0.0
    %175 = vmatpush1.msra.mxu0 %v54
    %176 = vmatprep.subr.mxu0 0.0
    %177 = vmatpush1.msra.mxu0 %v55
    %178 = vmatprep.subr.mxu0 0.0
    %179 = vmatpush1.msra.mxu0 %v56
    %180 = vmatprep.subr.mxu0 0.0
    %181 = vmatpush1.msra.mxu0 0.0
    %182 = vmatprep.subr.mxu0 0.0
    %183 = vmatpush1.msra.mxu0 0.0
    %184 = vmatprep.subr.mxu0 0.0
    %185 = vmatpush1.msra.mxu0 0.0
    %186 = vmatprep.subr.mxu0 0.0
    %187 = vmatpush1.msra.mxu0 0.0
    %188 = vmatprep.subr.mxu0 0.0
    %189 = vmatpush1.msra.mxu0 0.0
    %190 = vmatprep.subr.mxu0 0.0
    %191 = vmatpush1.msra.mxu0 0.0
    %192 = vmatprep.subr.mxu0 0.0
    %193 = vmatpush1.msra.mxu0 0.0
    %194 = vmatprep.subr.mxu0 0.0
    %195 = vmatpush1.msra.mxu0 0.0
    %196 = vmatprep.subr.mxu0 0.0
    %197 = vmatpush1.msra.mxu0 0.0
    %198 = vmatprep.subr.mxu0 0.0
    %199 = vmatpush1.msra.mxu0 0.0
    %200 = vmatprep.subr.mxu0 0.0
    %201 = vmatpush1.msra.mxu0 0.0
    %202 = vmatprep.subr.mxu0 0.0
    %203 = vmatpush1.msra.mxu0 0.0
    %204 = vmatprep.subr.mxu0 0.0
    %205 = vmatpush1.msra.mxu0 0.0
    %206 = vmatprep.subr.mxu0 0.0
    %207 = vmatpush1.msra.mxu0 0.0
    %208 = vmatprep.subr.mxu0 0.0
    %209 = vmatpush1.msra.mxu0 0.0
    %210 = vmatprep.subr.mxu0 0.0
    %211 = vmatpush1.msra.mxu0 0.0
    %212 = vmatprep.mubr.f32.mxu0 0.0
    %213 = vmatmul.mubr.f32.gmra.mrb[0].mxu0 %v147
    %v214 = vpop.f32.mrb[0].mxu0
    %v215 = vadd.f32 0.0, %v214
    %v216 = vpop.f32.mrb[0].mxu0
    %217 = vdwg.mxu0
    %218 = vst [vmem:[#allocation3] sm:$0xff] %v215
    // Predicated region
    $region22: #{mlp_sim_bn_forward.1} parent=1 // pred_check
      _
    $region23: #{mlp_sim_bn_forward.1} parent=1 // pred_check_branch
      %220 = sbr.rel (0) target = $region25
    $region24: #{mlp_sim_bn_forward.1} parent=1 // pred_region
      %s222 = ssub.s32 128, 128
      %223 = vsyncadd [#allocation4], %s222
      %s225 = sshll.u32 [#allocation3], 4
      %s226 = int_to_ptr.vmem [resolvable:$true] %s225
      %228 = dma.vmem_to_hbm [thread:$0]  %s226, 128, %s5, [#allocation4]
    $region25: #{mlp_sim_bn_forward.1} parent=1 // pred_fallthru
      _
    // Predicated region
    $region26: #{mlp_sim_bn_forward.1} parent=1 // pred_check
      _
    $region27: #{mlp_sim_bn_forward.1} parent=1 // pred_check_branch
      %230 = sbr.rel (0) target = $region29
    $region28: #{mlp_sim_bn_forward.1} parent=1 // pred_region
      %231 = dma.done [#allocation4], 128
    $region29: #{mlp_sim_bn_forward.1} parent=1 // pred_fallthru
      _
    %232 = vsyncpa [#allocation4], 1

</llo_original>
